<compile_context>
chip_gen: v7x
topology: tpu7x:2x2x1
jax: 0.10.0
libtpu: 0.0.40
codegen_flags: <defaults>
</compile_context>

<pallas_src>
import functools

import jax
import jax.numpy as jnp
from jax.experimental import pallas as pl
from jax.experimental.pallas import tpu as pltpu


def _take(elements, indexes):
    return list([elements[i] for i in indexes])


def _round_up(x, m):
    return (x + m - 1) // m * m


@functools.lru_cache(maxsize=None)
def _vmem_limit_bytes():
    # Generation-gated scoped-VMEM limit: ~half of physical VMEM, capped 96 MiB.
    #   v5e/v6e (128 MiB physical) -> 64 MiB;  v7x (64 MiB per TC) -> 32 MiB.
    try:
        cap = int(pltpu.get_tpu_info().vmem_capacity_bytes)
        return int(min(96 * 1024 * 1024, max(32 * 1024 * 1024, cap // 2)))
    except Exception:
        return 32 * 1024 * 1024


# Max K handled as a single VMEM-resident MXU pass (weight stays in VMEM).
_SINGLE_K_STEP_MAX = 2048


# ---------------------------------------------------------------------------
# Pallas kernels
# ---------------------------------------------------------------------------
def _mm_bias_relu_kernel(p_ref, w_ref, b_ref, o_ref):
    # Single K step: weight/bias use constant block indices (VMEM-resident,
    # DMA'd once), no accumulator scratch, direct fused bias + ReLU store.
    acc = jnp.dot(p_ref[...], w_ref[...], preferred_element_type=jnp.float32)
    o_ref[...] = jnp.maximum(acc + b_ref[...], 0.0).astype(o_ref.dtype)


def _mm_bias_relu_acc_kernel(p_ref, w_ref, b_ref, o_ref, acc_ref):
    # K-reduction fallback for large K (not exercised at the demo sizes).
    k = pl.program_id(1)
    part = jnp.dot(p_ref[...], w_ref[...], preferred_element_type=jnp.float32)

    @pl.when(k == 0)
    def _():
        acc_ref[...] = part + b_ref[...]      # bias folded into init; no zero pass

    @pl.when(k > 0)
    def _():
        acc_ref[...] += part

    @pl.when(k == pl.num_programs(1) - 1)
    def _():
        o_ref[...] = jnp.maximum(acc_ref[...], 0.0).astype(o_ref.dtype)


# ---------------------------------------------------------------------------
# Conv3x3 / stride-2 / pad-1 + bias + ReLU as a tiled Pallas matmul
# ---------------------------------------------------------------------------
def _pick_tm(M, Kp, Coutp, vmem_limit):
    """Pick (tm, mp): >=2 M tiles when M allows it, minimal padding, VMEM-aware."""
    def footprint(tm):  # rough double-buffered bytes
        return (2 * tm * Kp * 2          # patch tiles (bf16, double buffered)
                + 2 * Kp * Coutp * 2     # weight (bf16, conservatively x2)
                + 2 * tm * Coutp * 2     # output tiles (bf16)
                + tm * Coutp * 4)        # f32 accumulator / headroom
    tm_cap = 512
    if M >= 2048 and footprint(1024) <= vmem_limit // 2:
        tm_cap = 1024                    # bigger tiles when plenty of VMEM (v5e/v6e)
    n_tiles = max(2, -(-M // tm_cap))
    tm = max(8, _round_up(-(-M // n_tiles), 8))
    mp = _round_up(M, tm)
    return tm, mp


def conv3x3_s2_relu_nhwc(x_nhwc, w2d, b2d, cout):
    """3x3 / stride-2 / pad-1 conv + bias + ReLU on a bf16 NHWC activation.

    w2d: (Kp, Coutp) bf16 weight with (kh, kw, cin)-major rows.
    b2d: (1, Coutp)  f32 bias.
    Returns NHWC (B, Ho, Wo, cout) in bf16.
    """
    B, H, W, C = x_nhwc.shape
    Ho = (H + 2 - 3) // 2 + 1
    Wo = (W + 2 - 3) // 2 + 1
    K = 9 * C
    Kp, Coutp = w2d.shape
    M = B * Ho * Wo

    # im2col in bf16 (layout plumbing; stays inside the enclosing jit).
    # TODO(synk): fold the im2col into the kernel (manual DMA of 9 shifted row
    # slabs of the padded NHWC tensor) to remove the ~2.25x HBM slab entirely.
    xp = jnp.pad(x_nhwc, ((0, 0), (1, 1), (1, 1), (0, 0)))
    cols = []
    for kh in range(3):
        for kw in range(3):
            cols.append(xp[:, kh:kh + 2 * Ho - 1:2, kw:kw + 2 * Wo - 1:2, :])
    # patch feature ordering is (kh, kw, cin), fastest = cin (matches weight prep)
    patches = jnp.concatenate(cols, axis=-1).reshape(M, K)

    vmem_limit = _vmem_limit_bytes()
    tm, mp = _pick_tm(M, Kp, Coutp, vmem_limit)
    if mp != M or Kp != K:
        patches = jnp.pad(patches, ((0, mp - M), (0, Kp - K)))
    grid_m = mp // tm

    compiler_params_1d = pltpu.CompilerParams(
        dimension_semantics=("parallel",),
        vmem_limit_bytes=vmem_limit,
    )

    if Kp <= _SINGLE_K_STEP_MAX:
        out = pl.pallas_call(
            _mm_bias_relu_kernel,
            out_shape=jax.ShapeDtypeStruct((mp, Coutp), jnp.bfloat16),
            grid_spec=pltpu.PrefetchScalarGridSpec(
                num_scalar_prefetch=0,
                grid=(grid_m,),
                in_specs=[
                    pl.BlockSpec((tm, Kp), lambda i: (i, 0)),
                    pl.BlockSpec((Kp, Coutp), lambda i: (0, 0)),   # VMEM-resident
                    pl.BlockSpec((1, Coutp), lambda i: (0, 0)),    # VMEM-resident
                ],
                out_specs=pl.BlockSpec((tm, Coutp), lambda i: (i, 0)),
            ),
            compiler_params=compiler_params_1d,
        )(patches, w2d, b2d)
    else:
        tk = 128
        for c in range(min(Kp, 1024), 0, -128):
            if Kp % c == 0:
                tk = c
                break
        out = pl.pallas_call(
            _mm_bias_relu_acc_kernel,
            out_shape=jax.ShapeDtypeStruct((mp, Coutp), jnp.bfloat16),
            grid_spec=pltpu.PrefetchScalarGridSpec(
                num_scalar_prefetch=0,
                grid=(grid_m, Kp // tk),
                in_specs=[
                    pl.BlockSpec((tm, tk), lambda i, k: (i, k)),
                    pl.BlockSpec((tk, Coutp), lambda i, k: (k, 0)),
                    pl.BlockSpec((1, Coutp), lambda i, k: (0, 0)),
                ],
                out_specs=pl.BlockSpec((tm, Coutp), lambda i, k: (i, 0)),
                scratch_shapes=[pltpu.VMEM((tm, Coutp), jnp.float32)],
            ),
            compiler_params=pltpu.CompilerParams(
                dimension_semantics=("parallel", "arbitrary"),
                vmem_limit_bytes=vmem_limit,
            ),
        )(patches, w2d, b2d)

    # Crop only if padding was applied; crop + reshape fuses into one copy.
    if mp != M or Coutp != cout:
        out = out[:M, :cout]
    return out.reshape(B, Ho, Wo, cout)


# ---------------------------------------------------------------------------
# EncoderModule (Pallas-backed)
# ---------------------------------------------------------------------------
class PallasEncoderModule:
    """EncoderModule whose encoder_layers are Conv2d(3x3, s=2, p=1) + ReLU."""

    def __init__(self, in_channels, channels, strides, layers, key):
        assert len(channels) == len(strides)
        self._layers = list(layers)
        self._output_strides = _take(strides, layers)
        self._output_filters = _take(channels, layers)
        self._couts = list(channels)

        # PyTorch-layout params ((Cout,Cin,3,3),(Cout,)) + kernel-ready weights.
        self.params = []
        self._prepped = []
        c_in = in_channels
        for c_out in channels:
            key, kw_key, kb_key = jax.random.split(key, 3)
            fan_in = c_in * 9
            w = jax.random.normal(kw_key, (c_out, c_in, 3, 3), jnp.float32) / jnp.sqrt(fan_in)
            b = jax.random.normal(kb_key, (c_out,), jnp.float32) * 0.01
            self.params.append((w, b))

            K = 9 * c_in
            # Single-pass path keeps K exact; K-reduction path needs 128-aligned tiles.
            kp = K if K <= _SINGLE_K_STEP_MAX else _round_up(K, 128)
            # Only pad Cout when it is already large; tiny layers keep exact width
            # (no 16x over-compute / over-store, no post-kernel crop copy).
            coutp = _round_up(c_out, 128) if c_out >= 128 else c_out

            # (Cout, Cin, kh, kw) -> (kh, kw, Cin, Cout) -> (K, Cout), zero-pad exact.
            w2d = jnp.transpose(w, (2, 3, 1, 0)).reshape(K, c_out)
            w2d = jnp.pad(w2d, ((0, kp - K), (0, coutp - c_out))).astype(jnp.bfloat16)
            b2d = jnp.pad(b, (0, coutp - c_out)).reshape(1, coutp).astype(jnp.float32)
            self._prepped.append((w2d, b2d))
            c_in = c_out

        self._forward_jit = jax.jit(self._forward_impl)

    @property
    def output_strides(self):
        return self._output_strides

    @property
    def output_filters(self):
        return self._output_filters

    def _forward_impl(self, x_nchw, prepped):
        # NCHW -> NHWC and f32 -> bf16 exactly once; whole layer chain stays bf16.
        x = jnp.transpose(x_nchw, (0, 2, 3, 1)).astype(jnp.bfloat16)
        output_features = []
        # TODO(synk): fuse the whole layer chain into one pallas_call (or route
        # sub-1K-row late layers through lax.conv) to drop per-layer launch cost.
        for (w2d, b2d), c_out in zip(prepped, self._couts):   # == encoder_layers
            x = conv3x3_s2_relu_nhwc(x, w2d, b2d, c_out)
            output_features.append(x)
        selected = _take(output_features, self._layers)
        # Only the returned maps pay the NHWC -> NCHW transpose and f32 upcast.
        return tuple(jnp.transpose(f, (0, 3, 1, 2)).astype(jnp.float32)
                     for f in selected)

    def forward(self, x):
        return list(self._forward_jit(x, self._prepped))

    __call__ = forward


# ---------------------------------------------------------------------------
# Pure-JAX (XLA conv) reference of the same module, for a loose-tolerance check
# ---------------------------------------------------------------------------
def _ref_forward(x_nchw, params, layers_sel):
    feats = []
    h = x_nchw
    for w, b in params:
        h = jax.lax.conv_general_dilated(
            h, w, window_strides=(2, 2), padding=((1, 1), (1, 1)),
            dimension_numbers=("NCHW", "OIHW", "NCHW"))
        h = jax.nn.relu(h + b[None, :, None, None])
        feats.append(h)
    return _take(feats, layers_sel)


if __name__ == "__main__":
    key = jax.random.PRNGKey(0)
    key, xkey = jax.random.split(key)

    # Small shapes: batch=2, in_channels=4, spatial=16x16
    x = jax.random.normal(xkey, (2, 4, 16, 16), jnp.float32)

    channels = [8, 16, 32]       # per-layer output channels
    strides = [2, 4, 8]          # cumulative output strides
    layers = [0, 2]              # which feature maps to return (_take)

    enc = PallasEncoderModule(in_channels=4, channels=channels,
                              strides=strides, layers=layers, key=key)

    feats = enc(x)
    feats = [jax.block_until_ready(f) for f in feats]

    # sanity: shapes follow the stride-2 downsampling chain and _take selection
    expected_shapes = [(2, 8, 8, 8), (2, 32, 2, 2)]
    for f, es in zip(feats, expected_shapes):
        assert f.shape == es, (f.shape, es)
    assert enc.output_filters == [8, 32]
    assert enc.output_strides == [2, 8]
    assert all(bool(jnp.isfinite(f).all()) for f in feats)

    # loose-tolerance numerical check vs. f32 XLA conv (bf16 chain by design)
    refs = _ref_forward(x, enc.params, layers)
    for f, r in zip(feats, refs):
        assert bool(jnp.allclose(f, r, rtol=2e-1, atol=2e-1)), (
            float(jnp.max(jnp.abs(f - r))))

    print("KERNEL_OK")
</pallas_src>

<mosaic_0001>
module attributes {stable_mosaic.version = 11 : i64} {
  func.func @_mm_bias_relu_kernel(%arg0: i32, %arg1: memref<64x36xbf16, #tpu.memory_space<vmem>>, %arg2: memref<36x8xbf16, #tpu.memory_space<vmem>>, %arg3: memref<1x8xf32, #tpu.memory_space<vmem>>, %arg4: memref<64x8xbf16, #tpu.memory_space<vmem>>) attributes {dimension_semantics = [#tpu.dimension_semantics<parallel>], iteration_bounds = array<i64: 2>, scalar_prefetch = 0 : i64, scratch_operands = 0 : i64, tpu.core_type = #tpu.core_type<tc>, window_params = [{transform_indices = @transform_0, window_bounds = array<i64: 64, 36>}, {pipeline_mode = #tpu.pipeline_mode<synchronous>, transform_indices = @transform_1, window_bounds = array<i64: 36, 8>}, {pipeline_mode = #tpu.pipeline_mode<synchronous>, transform_indices = @transform_2, window_bounds = array<i64: 1, 8>}, {transform_indices = @transform_3, window_bounds = array<i64: 64, 8>}]} {
    %c0 = arith.constant 0 : index
    %c0_0 = arith.constant 0 : index
    %0 = vector.load %arg1[%c0, %c0_0] : memref<64x36xbf16, #tpu.memory_space<vmem>>, vector<64x36xbf16>
    %c0_1 = arith.constant 0 : index
    %c0_2 = arith.constant 0 : index
    %1 = vector.load %arg2[%c0_1, %c0_2] : memref<36x8xbf16, #tpu.memory_space<vmem>>, vector<36x8xbf16>
    %cst = arith.constant dense<0.000000e+00> : vector<64x8xf32>
    %2 = tpu.matmul %0, %1, %cst {dimension_numbers = #tpu.dot_dimension_numbers<[1], [0], [0], [1], [0, 0, 1, 1], [], []>} : vector<64x36xbf16>, vector<36x8xbf16>, vector<64x8xf32> -> vector<64x8xf32>
    %c0_3 = arith.constant 0 : index
    %c0_4 = arith.constant 0 : index
    %3 = vector.load %arg3[%c0_3, %c0_4] : memref<1x8xf32, #tpu.memory_space<vmem>>, vector<1x8xf32>
    %4 = vector.broadcast %3 : vector<1x8xf32> to vector<64x8xf32>
    %5 = arith.addf %2, %4 : vector<64x8xf32>
    %cst_5 = arith.constant 0.000000e+00 : f32
    %6 = vector.broadcast %cst_5 : f32 to vector<64x8xf32>
    %7 = arith.maximumf %5, %6 : vector<64x8xf32>
    %8 = arith.truncf %7 : vector<64x8xf32> to vector<64x8xbf16>
    %c0_6 = arith.constant 0 : index
    %c0_7 = arith.constant 0 : index
    %9 = vector.load %arg4[%c0_6, %c0_7] : memref<64x8xbf16, #tpu.memory_space<vmem>>, vector<64x8xbf16>
    tpu.vector_store %arg4[%c0_6, %c0_7], %8 {strides = array<i32>} : memref<64x8xbf16, #tpu.memory_space<vmem>>, vector<64x8xbf16>,
    return
  }
  func.func @transform_0(%arg0: i32) -> (i32, i32) {
    %c0_i32 = arith.constant 0 : i32
    %c0_i32_0 = arith.constant 0 : i32
    return %arg0, %c0_i32 : i32, i32
  }
  func.func @transform_1(%arg0: i32) -> (i32, i32) {
    %c0_i32 = arith.constant 0 : i32
    %c0_i32_0 = arith.constant 0 : i32
    %c0_i32_1 = arith.constant 0 : i32
    return %c0_i32, %c0_i32_0 : i32, i32
  }
  func.func @transform_2(%arg0: i32) -> (i32, i32) {
    %c0_i32 = arith.constant 0 : i32
    %c0_i32_0 = arith.constant 0 : i32
    %c0_i32_1 = arith.constant 0 : i32
    return %c0_i32, %c0_i32_0 : i32, i32
  }
  func.func @transform_3(%arg0: i32) -> (i32, i32) {
    %c0_i32 = arith.constant 0 : i32
    %c0_i32_0 = arith.constant 0 : i32
    return %arg0, %c0_i32 : i32, i32
  }
}

module attributes {stable_mosaic.version = 11 : i64} {
  func.func @_mm_bias_relu_kernel(%arg0: i32, %arg1: memref<16x72xbf16, #tpu.memory_space<vmem>>, %arg2: memref<72x16xbf16, #tpu.memory_space<vmem>>, %arg3: memref<1x16xf32, #tpu.memory_space<vmem>>, %arg4: memref<16x16xbf16, #tpu.memory_space<vmem>>) attributes {dimension_semantics = [#tpu.dimension_semantics<parallel>], iteration_bounds = array<i64: 2>, scalar_prefetch = 0 : i64, scratch_operands = 0 : i64, tpu.core_type = #tpu.core_type<tc>, window_params = [{transform_indices = @transform_0, window_bounds = array<i64: 16, 72>}, {pipeline_mode = #tpu.pipeline_mode<synchronous>, transform_indices = @transform_1, window_bounds = array<i64: 72, 16>}, {pipeline_mode = #tpu.pipeline_mode<synchronous>, transform_indices = @transform_2, window_bounds = array<i64: 1, 16>}, {transform_indices = @transform_3, window_bounds = array<i64: 16, 16>}]} {
    %c0 = arith.constant 0 : index
    %c0_0 = arith.constant 0 : index
    %0 = vector.load %arg1[%c0, %c0_0] : memref<16x72xbf16, #tpu.memory_space<vmem>>, vector<16x72xbf16>
    %c0_1 = arith.constant 0 : index
    %c0_2 = arith.constant 0 : index
    %1 = vector.load %arg2[%c0_1, %c0_2] : memref<72x16xbf16, #tpu.memory_space<vmem>>, vector<72x16xbf16>
    %cst = arith.constant dense<0.000000e+00> : vector<16x16xf32>
    %2 = tpu.matmul %0, %1, %cst {dimension_numbers = #tpu.dot_dimension_numbers<[1], [0], [0], [1], [0, 0, 1, 1], [], []>} : vector<16x72xbf16>, vector<72x16xbf16>, vector<16x16xf32> -> vector<16x16xf32>
    %c0_3 = arith.constant 0 : index
    %c0_4 = arith.constant 0 : index
    %3 = vector.load %arg3[%c0_3, %c0_4] : memref<1x16xf32, #tpu.memory_space<vmem>>, vector<1x16xf32>
    %4 = vector.broadcast %3 : vector<1x16xf32> to vector<16x16xf32>
    %5 = arith.addf %2, %4 : vector<16x16xf32>
    %cst_5 = arith.constant 0.000000e+00 : f32
    %6 = vector.broadcast %cst_5 : f32 to vector<16x16xf32>
    %7 = arith.maximumf %5, %6 : vector<16x16xf32>
    %8 = arith.truncf %7 : vector<16x16xf32> to vector<16x16xbf16>
    %c0_6 = arith.constant 0 : index
    %c0_7 = arith.constant 0 : index
    %9 = vector.load %arg4[%c0_6, %c0_7] : memref<16x16xbf16, #tpu.memory_space<vmem>>, vector<16x16xbf16>
    tpu.vector_store %arg4[%c0_6, %c0_7], %8 {strides = array<i32>} : memref<16x16xbf16, #tpu.memory_space<vmem>>, vector<16x16xbf16>,
    return
  }
  func.func @transform_0(%arg0: i32) -> (i32, i32) {
    %c0_i32 = arith.constant 0 : i32
    %c0_i32_0 = arith.constant 0 : i32
    return %arg0, %c0_i32 : i32, i32
  }
  func.func @transform_1(%arg0: i32) -> (i32, i32) {
    %c0_i32 = arith.constant 0 : i32
    %c0_i32_0 = arith.constant 0 : i32
    %c0_i32_1 = arith.constant 0 : i32
    return %c0_i32, %c0_i32_0 : i32, i32
  }
  func.func @transform_2(%arg0: i32) -> (i32, i32) {
    %c0_i32 = arith.constant 0 : i32
    %c0_i32_0 = arith.constant 0 : i32
    %c0_i32_1 = arith.constant 0 : i32
    return %c0_i32, %c0_i32_0 : i32, i32
  }
  func.func @transform_3(%arg0: i32) -> (i32, i32) {
    %c0_i32 = arith.constant 0 : i32
    %c0_i32_0 = arith.constant 0 : i32
    return %arg0, %c0_i32 : i32, i32
  }
}

module attributes {stable_mosaic.version = 11 : i64} {
  func.func @_mm_bias_relu_kernel(%arg0: i32, %arg1: memref<8x144xbf16, #tpu.memory_space<vmem>>, %arg2: memref<144x32xbf16, #tpu.memory_space<vmem>>, %arg3: memref<1x32xf32, #tpu.memory_space<vmem>>, %arg4: memref<8x32xbf16, #tpu.memory_space<vmem>>) attributes {dimension_semantics = [#tpu.dimension_semantics<parallel>], iteration_bounds = array<i64: 1>, scalar_prefetch = 0 : i64, scratch_operands = 0 : i64, tpu.core_type = #tpu.core_type<tc>, window_params = [{transform_indices = @transform_0, window_bounds = array<i64: 8, 144>}, {pipeline_mode = #tpu.pipeline_mode<synchronous>, transform_indices = @transform_1, window_bounds = array<i64: 144, 32>}, {pipeline_mode = #tpu.pipeline_mode<synchronous>, transform_indices = @transform_2, window_bounds = array<i64: 1, 32>}, {transform_indices = @transform_3, window_bounds = array<i64: 8, 32>}]} {
    %c0 = arith.constant 0 : index
    %c0_0 = arith.constant 0 : index
    %0 = vector.load %arg1[%c0, %c0_0] : memref<8x144xbf16, #tpu.memory_space<vmem>>, vector<8x144xbf16>
    %c0_1 = arith.constant 0 : index
    %c0_2 = arith.constant 0 : index
    %1 = vector.load %arg2[%c0_1, %c0_2] : memref<144x32xbf16, #tpu.memory_space<vmem>>, vector<144x32xbf16>
    %cst = arith.constant dense<0.000000e+00> : vector<8x32xf32>
    %2 = tpu.matmul %0, %1, %cst {dimension_numbers = #tpu.dot_dimension_numbers<[1], [0], [0], [1], [0, 0, 1, 1], [], []>} : vector<8x144xbf16>, vector<144x32xbf16>, vector<8x32xf32> -> vector<8x32xf32>
    %c0_3 = arith.constant 0 : index
    %c0_4 = arith.constant 0 : index
    %3 = vector.load %arg3[%c0_3, %c0_4] : memref<1x32xf32, #tpu.memory_space<vmem>>, vector<1x32xf32>
    %4 = vector.broadcast %3 : vector<1x32xf32> to vector<8x32xf32>
    %5 = arith.addf %2, %4 : vector<8x32xf32>
    %cst_5 = arith.constant 0.000000e+00 : f32
    %6 = vector.broadcast %cst_5 : f32 to vector<8x32xf32>
    %7 = arith.maximumf %5, %6 : vector<8x32xf32>
    %8 = arith.truncf %7 : vector<8x32xf32> to vector<8x32xbf16>
    %c0_6 = arith.constant 0 : index
    %c0_7 = arith.constant 0 : index
    %9 = vector.load %arg4[%c0_6, %c0_7] : memref<8x32xbf16, #tpu.memory_space<vmem>>, vector<8x32xbf16>
    tpu.vector_store %arg4[%c0_6, %c0_7], %8 {strides = array<i32>} : memref<8x32xbf16, #tpu.memory_space<vmem>>, vector<8x32xbf16>,
    return
  }
  func.func @transform_0(%arg0: i32) -> (i32, i32) {
    %c0_i32 = arith.constant 0 : i32
    %c0_i32_0 = arith.constant 0 : i32
    return %arg0, %c0_i32 : i32, i32
  }
  func.func @transform_1(%arg0: i32) -> (i32, i32) {
    %c0_i32 = arith.constant 0 : i32
    %c0_i32_0 = arith.constant 0 : i32
    %c0_i32_1 = arith.constant 0 : i32
    return %c0_i32, %c0_i32_0 : i32, i32
  }
  func.func @transform_2(%arg0: i32) -> (i32, i32) {
    %c0_i32 = arith.constant 0 : i32
    %c0_i32_0 = arith.constant 0 : i32
    %c0_i32_1 = arith.constant 0 : i32
    return %c0_i32, %c0_i32_0 : i32, i32
  }
  func.func @transform_3(%arg0: i32) -> (i32, i32) {
    %c0_i32 = arith.constant 0 : i32
    %c0_i32_0 = arith.constant 0 : i32
    return %arg0, %c0_i32 : i32, i32
  }
}

</mosaic_0001>

<llo_original>
// kernel: _forward_impl.3
$region0: #{_forward_impl.3}
  #allocation0 [shape = 'u32[]', space=smem, size = 0x4, offset = 0x4, fixed_abs, tag = 'smem constant byte address 0x4 - core index']
  #allocation1 [shape = 'u32[144,128]{1,0:T(1,128)}', space=vmem, size = 0x12000, scoped, tag = 'internal scratch']
  %s0 = inlined_call_operand.vmem [shape: bf16[128,36], index: 0, kind: input, shape index: {}]
  %s1 = inlined_call_operand.vmem [shape: bf16[36,8], index: 1, kind: input, shape index: {}]
  %s2 = inlined_call_operand.vmem [shape: f32[1,8], index: 2, kind: input, shape index: {}]
  %s3 = inlined_call_operand.vmem [shape: bf16[128,8], index: 3, kind: output, shape index: {}]
  %s4 = sld [smem:[#allocation0]]
  $region45: #{_forward_impl.3} parent=0
    _
  %s6 = ssub.s32 1, %s4
  %s7 = scalar_select 0, %s6, %s4
  loop: start=0, step=1, limit=4
  $region2: #{_forward_impl.3} parent=0 // loop_pre_header
    _
  $region3: #{_forward_impl.3} parent=0 // loop_header
    %s9 = sphi 0, %s13
    %p10 = scmp.ge.s32.totalorder %s9, 4
    %s19 = sphi 0, %s21
    %s22 = sphi 0, %s19
    %s23 = sphi 0, %s22
    %s39 = sphi 0, %s23
    %s43 = sphi 0, %s43
    %s45 = sphi 0, %s43
    %s46 = sphi 0, %s45
    %s60 = sphi 0, %s46
    %s64 = sphi 0, %s64
    %s66 = sphi 0, %s64
    %s67 = sphi 0, %s66
    %s81 = sphi 0, %s67
    %s87 = sphi 0, %s89
    %s90 = sphi 0, %s87
    %s91 = sphi 0, %s90
    %s107 = sphi 0, %s91
  $region4: #{_forward_impl.3} parent=0 // loop_header_branch
    %12 = sbr.rel (%p10) target = $region8
  $region5: #{_forward_impl.3} parent=0 // loop_body
    %s14 = ssub.s32 %s9, 1
    %s15 = ssub.s32 %s9, 2
    %s16 = sadd.s32 %s9, 1
    %s17 = ssub.s32 %s9, %s16
    %p18 = scmp.eq.s32.totalorder %s17, 0
    %s20 = sadd.s32 %s19, 1
    %s21 = scalar_select %p18, %s19, %s20
    %p24 = pneg %p18
    %p25 = scmp.eq.s32.totalorder %s9, 1
    %p26 = por %p24, %p25
    %p27 = scmp.ne.s32.totalorder %s19, %s22
    %p28 = scmp.eq.s32.totalorder %s9, 0
    %p29 = por %p27, %p28
    %p30 = scmp.ne.s32.totalorder %s19, %s22
    %p31 = scmp.eq.s32.totalorder %s14, 1
    %p32 = por %p30, %p31
    %p33 = scmp.ne.s32.totalorder %s22, %s23
    %p34 = scmp.eq.s32.totalorder %s14, 0
    %p35 = por %p33, %p34
    %p36 = scmp.ne.s32.totalorder %s22, %s23
    %p37 = scmp.eq.s32.totalorder %s15, 1
    %p38 = por %p36, %p37
    %p40 = scmp.ne.s32.totalorder %s23, %s39
    %p41 = scmp.eq.s32.totalorder %s15, 0
    %p42 = por %p40, %p41
    %s44 = sadd.s32 %s43, 1
    %p47 = scmp.eq.s32.totalorder %s9, 1
    %p48 = scmp.ne.s32.totalorder %s43, %s45
    %p49 = scmp.eq.s32.totalorder %s9, 0
    %p50 = por %p48, %p49
    %p51 = scmp.ne.s32.totalorder %s43, %s45
    %p52 = scmp.eq.s32.totalorder %s14, 1
    %p53 = por %p51, %p52
    %p54 = scmp.ne.s32.totalorder %s45, %s46
    %p55 = scmp.eq.s32.totalorder %s14, 0
    %p56 = por %p54, %p55
    %p57 = scmp.ne.s32.totalorder %s45, %s46
    %p58 = scmp.eq.s32.totalorder %s15, 1
    %p59 = por %p57, %p58
    %p61 = scmp.ne.s32.totalorder %s46, %s60
    %p62 = scmp.eq.s32.totalorder %s15, 0
    %p63 = por %p61, %p62
    %s65 = sadd.s32 %s64, 1
    %p68 = scmp.eq.s32.totalorder %s9, 1
    %p69 = scmp.ne.s32.totalorder %s64, %s66
    %p70 = scmp.eq.s32.totalorder %s9, 0
    %p71 = por %p69, %p70
    %p72 = scmp.ne.s32.totalorder %s64, %s66
    %p73 = scmp.eq.s32.totalorder %s14, 1
    %p74 = por %p72, %p73
    %p75 = scmp.ne.s32.totalorder %s66, %s67
    %p76 = scmp.eq.s32.totalorder %s14, 0
    %p77 = por %p75, %p76
    %p78 = scmp.ne.s32.totalorder %s66, %s67
    %p79 = scmp.eq.s32.totalorder %s15, 1
    %p80 = por %p78, %p79
    %p82 = scmp.ne.s32.totalorder %s67, %s81
    %p83 = scmp.eq.s32.totalorder %s15, 0
    %p84 = por %p82, %p83
    %s85 = ssub.s32 %s9, %s16
    %p86 = scmp.eq.s32.totalorder %s85, 0
    %s88 = sadd.s32 %s87, 1
    %s89 = scalar_select %p86, %s87, %s88
    %p92 = pneg %p86
    %p93 = scmp.eq.s32.totalorder %s9, 1
    %p94 = por %p92, %p93
    %p95 = scmp.ne.s32.totalorder %s87, %s90
    %p96 = scmp.eq.s32.totalorder %s9, 0
    %p97 = por %p95, %p96
    %p98 = scmp.ne.s32.totalorder %s87, %s90
    %p99 = scmp.eq.s32.totalorder %s14, 1
    %p100 = por %p98, %p99
    %p101 = scmp.ne.s32.totalorder %s90, %s91
    %p102 = scmp.eq.s32.totalorder %s14, 0
    %p103 = por %p101, %p102
    %p104 = scmp.ne.s32.totalorder %s90, %s91
    %p105 = scmp.eq.s32.totalorder %s15, 1
    %p106 = por %p104, %p105
    %p108 = scmp.ne.s32.totalorder %s91, %s107
    %p109 = scmp.eq.s32.totalorder %s15, 0
    %p110 = por %p108, %p109
    %p111 = scmp.le.s32.totalorder 1, %s9
    %p112 = scmp.lt.s32.totalorder %s9, 3
    %p113 = pnand %p111, %p112
    %p114 = pneg %p113
    // Predicated region
    $region9: #{_forward_impl.3} parent=5 // pred_check
      _
    $region10: #{_forward_impl.3} parent=5 // pred_check_branch
      %116 = sbr.rel (%p113) target = $region12
    $region11: #{_forward_impl.3} parent=5 // pred_region
      %s117 = ssub.s32 %s9, 1
      // Predicated region
      $region13: #{_forward_impl.3} parent=11 // pred_check
        %p118 = pneg %p56
      $region14: #{_forward_impl.3} parent=11 // pred_check_branch
        %120 = sbr.rel (%p118) target = $region16
      $region15: #{_forward_impl.3} parent=11 // pred_region
        _
      $region16: #{_forward_impl.3} parent=11 // pred_fallthru
        _
      // Predicated region
      $region17: #{_forward_impl.3} parent=11 // pred_check
        %p121 = pneg %p77
      $region18: #{_forward_impl.3} parent=11 // pred_check_branch
        %123 = sbr.rel (%p121) target = $region20
      $region19: #{_forward_impl.3} parent=11 // pred_region
        _
      $region20: #{_forward_impl.3} parent=11 // pred_fallthru
        _
    $region12: #{_forward_impl.3} parent=5 // pred_fallthru
      _
    %p124 = scmp.lt.s32.totalorder %s9, 2
    // Predicated region
    $region21: #{_forward_impl.3} parent=5 // pred_check
      %p125 = pneg %p124
    $region22: #{_forward_impl.3} parent=5 // pred_check_branch
      %127 = sbr.rel (%p125) target = $region24
    $region23: #{_forward_impl.3} parent=5 // pred_region
      // Predicated region
      $region25: #{_forward_impl.3} parent=23 // pred_check
        %p128 = pneg %p29
      $region26: #{_forward_impl.3} parent=23 // pred_check_branch
        %130 = sbr.rel (%p128) target = $region28
      $region27: #{_forward_impl.3} parent=23 // pred_region
        %s131 = smul.u32 8, %s9
        %p132 = scmp.lt.s32.totalorder %s131, 15
        %s133 = scalar_select %p132, %s131, 15
        %s134 = smul.addr %s133, 4
        %s135 = scalar_lea.vmem %s0, %s134
        %s136 = smul.u32 8, %s9
      $region28: #{_forward_impl.3} parent=23 // pred_fallthru
        _
    $region24: #{_forward_impl.3} parent=5 // pred_fallthru
      _
    %p137 = scmp.le.s32.totalorder 1, %s9
    %p138 = scmp.lt.s32.totalorder %s9, 3
    %p139 = pnand %p137, %p138
    %p140 = pneg %p139
    // Predicated region
    $region29: #{_forward_impl.3} parent=5 // pred_check
      _
    $region30: #{_forward_impl.3} parent=5 // pred_check_branch
      %142 = sbr.rel (%p139) target = $region32
    $region31: #{_forward_impl.3} parent=5 // pred_region
      %s143 = ssub.s32 %s9, 1
      %s144 = smul.u32 8, %s14
      %p145 = scmp.lt.s32.totalorder %s144, 15
      %s146 = scalar_select %p145, %s144, 15
      %s147 = smul.addr %s146, 4
      %s148 = scalar_lea.vmem %s0, %s147
      %p149 = pneg %p35
      %p150 = pneg %p32
      %p151 = pneg %p56
      %p152 = pneg %p53
      %p153 = pneg %p77
      %p154 = pneg %p74
      %p155 = pneg %p103
      %p156 = pneg %p100
      %s157 = smul.u32 8, %s14
      %p158 = scmp.lt.s32.totalorder %s157, 15
      %s159 = scalar_select %p158, %s157, 15
      %s160 = smul.addr %s159, 4
      %s161 = scalar_lea.vmem %s3, %s160
      %s162 = smul.u32 8, %s14
      %p163 = scmp.lt.s32.totalorder %s162, 15
      %s164 = scalar_select %p163, %s162, 15
      %s165 = smul.addr %s164, 4
      %s166 = scalar_lea.vmem %s0, %s165
      %s167 = smul.u32 8, %s14
      %s168 = smul.u32 8, %s14
      %p169 = scmp.lt.s32.totalorder %s168, 15
      %s170 = scalar_select %p169, %s168, 15
      %s171 = smul.addr %s170, 4
      %s172 = scalar_lea.vmem %s3, %s171
      %s173 = smul.u32 8, %s14
      %v175 = vld [vmem:[%s166] sm:$0xf]
      %v176 = vld [vmem:[%s166 + $0x4] sm:$0xf]
      %v177 = vld [vmem:[%s166 + $0x8] sm:$0xf]
      %v178 = vld [vmem:[%s166 + $0xc] sm:$0xf]
      %v179 = vld [vmem:[%s166 + $0x10] sm:$0xf]
      %v180 = vld [vmem:[%s166 + $0x14] sm:$0xf]
      %v181 = vld [vmem:[%s166 + $0x18] sm:$0xf]
      %v182 = vld [vmem:[%s166 + $0x1c] sm:$0xf]
      %v183 = vld [vmem:[%s1] sm:$0xf]
      %v184 = vld [vmem:[%s1 + $0x4] sm:$0xf]
      %v185 = vld [vmem:[%s1 + $0x8] sm:$0xf]
      %v186 = vld [vmem:[%s1 + $0xc] sm:$0xf]
      %v187 = vld [vmem:[%s1 + $0x10] sm:$0x3]
      %v188 = vld [vmem:[%s2] sm:$0x1]
      %v190 = vlaneseq
      %v191 = vshrl.u32 %v190, 7
      %v192 = vsub.s32 0, %v191
      %v193 = vrot.slane %v188, %v192
      %v203 = vunpack.c.l.b16 %v175
      %v204 = vunpack.c.l.b16 %v176
      %v205 = vunpack.c.l.b16 %v177
      %v206 = vunpack.c.l.b16 %v178
      %v207 = vunpack.c.l.b16 %v179
      %v208 = vunpack.c.l.b16 %v180
      %v209 = vunpack.c.l.b16 %v181
      %v210 = vunpack.c.l.b16 %v182
      %v211 = vpack.c.b16 %v204, %v203
      %v212 = vpack.c.b16 %v206, %v205
      %v213 = vpack.c.b16 %v208, %v207
      %v214 = vpack.c.b16 %v210, %v209
      %v220 = vunpack.c.l.b16 %v183
      %v221 = vunpack.c.l.b16 %v184
      %v222 = vunpack.c.l.b16 %v185
      %v223 = vunpack.c.l.b16 %v186
      %v224 = vunpack.c.l.b16 %v187
      %v225 = vpack.c.b16 %v221, %v220
      %v226 = vpack.c.b16 %v223, %v222
      %v227 = vpack.c.b16 %v224, %v224
      %vm230 = vcmask 293888
      %v232 = vsel %vm230, %v211, 0
      %v235 = vsel %vm230, %v212, 0
      %v238 = vsel %vm230, %v213, 0
      %v241 = vsel %vm230, %v214, 0
      %vm243 = vcmask 1041408
      %v245 = vsel %vm243, %v227, 0
      %247 = vmatprep.subr.bf16.mxu0 0
      %248 = vmatpush1.bf16.msra.mxu0 %v225
      %249 = vmatprep.subr.bf16.mxu0 0
      %250 = vmatpush1.bf16.msra.mxu0 %v226
      %251 = vmatprep.subr.bf16.mxu0 0
      %252 = vmatpush1.bf16.msra.mxu0 %v245
      %253 = vmatprep.subr.bf16.mxu0 0
      %254 = vmatpush1.bf16.msra.mxu0 0
      %255 = vmatprep.subr.bf16.mxu0 0
      %256 = vmatpush1.bf16.msra.mxu0 0
      %257 = vmatprep.subr.bf16.mxu0 0
      %258 = vmatpush1.bf16.msra.mxu0 0
      %259 = vmatprep.subr.bf16.mxu0 0
      %260 = vmatpush1.bf16.msra.mxu0 0
      %261 = vmatprep.subr.bf16.mxu0 0
      %262 = vmatpush1.bf16.msra.mxu0 0
      %263 = vmatprep.subr.bf16.mxu0 0
      %264 = vmatpush1.bf16.msra.mxu0 0
      %265 = vmatprep.subr.bf16.mxu0 0
      %266 = vmatpush1.bf16.msra.mxu0 0
      %267 = vmatprep.subr.bf16.mxu0 0
      %268 = vmatpush1.bf16.msra.mxu0 0
      %269 = vmatprep.subr.bf16.mxu0 0
      %270 = vmatpush1.bf16.msra.mxu0 0
      %271 = vmatprep.subr.bf16.mxu0 0
      %272 = vmatpush1.bf16.msra.mxu0 0
      %273 = vmatprep.subr.bf16.mxu0 0
      %274 = vmatpush1.bf16.msra.mxu0 0
      %275 = vmatprep.subr.bf16.mxu0 0
      %276 = vmatpush1.bf16.msra.mxu0 0
      %277 = vmatprep.subr.bf16.mxu0 0
      %278 = vmatpush1.bf16.msra.mxu0 0
      %279 = vmatprep.mubr.bf16.mxu0 0
      %280 = vmatmul.mubr.bf16.gmra.mrb[0].mxu0 %v232
      %v281 = vpop.f32.mrb[0].mxu0
      %v282 = vadd.f32 %v193, %v281
      %v283 = vpop.f32.mrb[0].mxu0
      %v284 = vpop.f32.mrb[0].mxu0
      %v285 = vadd.f32 %v193, %v284
      %v286 = vpop.f32.mrb[0].mxu0
      %287 = vmatprep.mubr.bf16.mxu0 0
      %288 = vmatmul.mubr.bf16.gmra.mrb[0].mxu0 %v235
      %v289 = vpop.f32.mrb[0].mxu0
      %v290 = vadd.f32 %v193, %v289
      %v291 = vpop.f32.mrb[0].mxu0
      %v292 = vpop.f32.mrb[0].mxu0
      %v293 = vadd.f32 %v193, %v292
      %v294 = vpop.f32.mrb[0].mxu0
      %295 = vmatprep.mubr.bf16.mxu0 0
      %296 = vmatmul.mubr.bf16.gmra.mrb[0].mxu0 %v238
      %v297 = vpop.f32.mrb[0].mxu0
      %v298 = vadd.f32 %v193, %v297
      %v299 = vpop.f32.mrb[0].mxu0
      %v300 = vpop.f32.mrb[0].mxu0
      %v301 = vadd.f32 %v193, %v300
      %v302 = vpop.f32.mrb[0].mxu0
      %303 = vmatprep.mubr.bf16.mxu0 0
      %304 = vmatmul.mubr.bf16.gmra.mrb[0].mxu0 %v241
      %v305 = vpop.f32.mrb[0].mxu0
      %v306 = vadd.f32 %v193, %v305
      %v307 = vpop.f32.mrb[0].mxu0
      %v308 = vpop.f32.mrb[0].mxu0
      %v309 = vadd.f32 %v193, %v308
      %v310 = vpop.f32.mrb[0].mxu0
      %311 = vdwg.mxu0
      %v312 = vmax.f32 %v282, 0.0
      %v313 = vmax.f32 %v285, 0.0
      %v314 = vmax.f32 %v290, 0.0
      %v315 = vmax.f32 %v293, 0.0
      %v316 = vmax.f32 %v298, 0.0
      %v317 = vmax.f32 %v301, 0.0
      %v318 = vmax.f32 %v306, 0.0
      %v319 = vmax.f32 %v309, 0.0
      %v320 = vpack.c.bf16 %v313, %v312
      %v321 = vpack.c.bf16 %v315, %v314
      %v322 = vpack.c.bf16 %v317, %v316
      %v323 = vpack.c.bf16 %v319, %v318
      %v328 = vunpack.c.l.b16 %v320
      %v329 = vunpack.c.h.b16 %v320
      %v330 = vunpack.c.l.b16 %v321
      %v331 = vunpack.c.h.b16 %v321
      %v332 = vunpack.c.l.b16 %v322
      %v333 = vunpack.c.h.b16 %v322
      %v334 = vunpack.c.l.b16 %v323
      %v335 = vunpack.c.h.b16 %v323
      %v336 = vpack.c.b16 %v328, %v328
      %v337 = vpack.c.b16 %v329, %v329
      %v338 = vpack.c.b16 %v330, %v330
      %v339 = vpack.c.b16 %v331, %v331
      %v340 = vpack.c.b16 %v332, %v332
      %v341 = vpack.c.b16 %v333, %v333
      %v342 = vpack.c.b16 %v334, %v334
      %v343 = vpack.c.b16 %v335, %v335
      %vm352 = vcmask 60416
      %353 = vst.msk [vmem:[%s172] sm:$0xf] %vm352, %v336
      %354 = vst.msk [vmem:[%s172 + $0x4] sm:$0xf] %vm352, %v337
      %355 = vst.msk [vmem:[%s172 + $0x8] sm:$0xf] %vm352, %v338
      %356 = vst.msk [vmem:[%s172 + $0xc] sm:$0xf] %vm352, %v339
      %357 = vst.msk [vmem:[%s172 + $0x10] sm:$0xf] %vm352, %v340
      %358 = vst.msk [vmem:[%s172 + $0x14] sm:$0xf] %vm352, %v341
      %359 = vst.msk [vmem:[%s172 + $0x18] sm:$0xf] %vm352, %v342
      %360 = vst.msk [vmem:[%s172 + $0x1c] sm:$0xf] %vm352, %v343
      %s361 = smul.u32 8, %s14
      %p362 = scmp.lt.s32.totalorder %s361, 15
      %s363 = scalar_select %p362, %s361, 15
      %s364 = smul.addr %s363, 4
      %s365 = scalar_lea.vmem %s3, %s364
      // Predicated region
      $region33: #{_forward_impl.3} parent=31 // pred_check
        %p366 = pneg %p100
      $region34: #{_forward_impl.3} parent=31 // pred_check_branch
        %368 = sbr.rel (%p366) target = $region36
      $region35: #{_forward_impl.3} parent=31 // pred_region
        %s369 = smul.u32 8, %s14
      $region36: #{_forward_impl.3} parent=31 // pred_fallthru
        _
    $region32: #{_forward_impl.3} parent=5 // pred_fallthru
      _
    %p370 = scmp.le.s32.totalorder 2, %s9
    // Predicated region
    $region37: #{_forward_impl.3} parent=5 // pred_check
      %p371 = pneg %p370
    $region38: #{_forward_impl.3} parent=5 // pred_check_branch
      %373 = sbr.rel (%p371) target = $region40
    $region39: #{_forward_impl.3} parent=5 // pred_region
      %s374 = ssub.s32 %s9, 2
      // Predicated region
      $region41: #{_forward_impl.3} parent=39 // pred_check
        %p375 = pneg %p106
      $region42: #{_forward_impl.3} parent=39 // pred_check_branch
        %377 = sbr.rel (%p375) target = $region44
      $region43: #{_forward_impl.3} parent=39 // pred_region
        %s378 = smul.u32 8, %s15
        %p379 = scmp.lt.s32.totalorder %s378, 15
        %s380 = scalar_select %p379, %s378, 15
        %s381 = smul.addr %s380, 4
        %s382 = scalar_lea.vmem %s3, %s381
      $region44: #{_forward_impl.3} parent=39 // pred_fallthru
        _
    $region40: #{_forward_impl.3} parent=5 // pred_fallthru
      _
  $region6: #{_forward_impl.3} parent=0 // loop_footer
    %s13 = sadd.s32 1, %s9
  $region7: #{_forward_impl.3} parent=0 // loop_footer_branch
    %8 = sbr.rel target = $region3
  $region8: #{_forward_impl.3} parent=0 // loop_exit
    _

// kernel: _forward_impl.4
$region0: #{_forward_impl.4}
  #allocation0 [shape = 'u32[]', space=smem, size = 0x4, offset = 0x4, fixed_abs, tag = 'smem constant byte address 0x4 - core index']
  #allocation1 [shape = 'u32[144,128]{1,0:T(1,128)}', space=vmem, size = 0x12000, scoped, tag = 'internal scratch']
  %s0 = inlined_call_operand.vmem [shape: bf16[32,72], index: 0, kind: input, shape index: {}]
  %s1 = inlined_call_operand.vmem [shape: bf16[72,16], index: 1, kind: input, shape index: {}]
  %s2 = inlined_call_operand.vmem [shape: f32[1,16], index: 2, kind: input, shape index: {}]
  %s3 = inlined_call_operand.vmem [shape: bf16[32,16], index: 3, kind: output, shape index: {}]
  %s4 = sld [smem:[#allocation0]]
  $region45: #{_forward_impl.4} parent=0
    _
  %s6 = ssub.s32 1, %s4
  %s7 = scalar_select 0, %s6, %s4
  loop: start=0, step=1, limit=4
  $region2: #{_forward_impl.4} parent=0 // loop_pre_header
    _
  $region3: #{_forward_impl.4} parent=0 // loop_header
    %s9 = sphi 0, %s13
    %p10 = scmp.ge.s32.totalorder %s9, 4
    %s19 = sphi 0, %s21
    %s22 = sphi 0, %s19
    %s23 = sphi 0, %s22
    %s39 = sphi 0, %s23
    %s43 = sphi 0, %s43
    %s45 = sphi 0, %s43
    %s46 = sphi 0, %s45
    %s60 = sphi 0, %s46
    %s64 = sphi 0, %s64
    %s66 = sphi 0, %s64
    %s67 = sphi 0, %s66
    %s81 = sphi 0, %s67
    %s87 = sphi 0, %s89
    %s90 = sphi 0, %s87
    %s91 = sphi 0, %s90
    %s107 = sphi 0, %s91
  $region4: #{_forward_impl.4} parent=0 // loop_header_branch
    %12 = sbr.rel (%p10) target = $region8
  $region5: #{_forward_impl.4} parent=0 // loop_body
    %s14 = ssub.s32 %s9, 1
    %s15 = ssub.s32 %s9, 2
    %s16 = sadd.s32 %s9, 1
    %s17 = ssub.s32 %s9, %s16
    %p18 = scmp.eq.s32.totalorder %s17, 0
    %s20 = sadd.s32 %s19, 1
    %s21 = scalar_select %p18, %s19, %s20
    %p24 = pneg %p18
    %p25 = scmp.eq.s32.totalorder %s9, 1
    %p26 = por %p24, %p25
    %p27 = scmp.ne.s32.totalorder %s19, %s22
    %p28 = scmp.eq.s32.totalorder %s9, 0
    %p29 = por %p27, %p28
    %p30 = scmp.ne.s32.totalorder %s19, %s22
    %p31 = scmp.eq.s32.totalorder %s14, 1
    %p32 = por %p30, %p31
    %p33 = scmp.ne.s32.totalorder %s22, %s23
    %p34 = scmp.eq.s32.totalorder %s14, 0
    %p35 = por %p33, %p34
    %p36 = scmp.ne.s32.totalorder %s22, %s23
    %p37 = scmp.eq.s32.totalorder %s15, 1
    %p38 = por %p36, %p37
    %p40 = scmp.ne.s32.totalorder %s23, %s39
    %p41 = scmp.eq.s32.totalorder %s15, 0
    %p42 = por %p40, %p41
    %s44 = sadd.s32 %s43, 1
    %p47 = scmp.eq.s32.totalorder %s9, 1
    %p48 = scmp.ne.s32.totalorder %s43, %s45
    %p49 = scmp.eq.s32.totalorder %s9, 0
    %p50 = por %p48, %p49
    %p51 = scmp.ne.s32.totalorder %s43, %s45
    %p52 = scmp.eq.s32.totalorder %s14, 1
    %p53 = por %p51, %p52
    %p54 = scmp.ne.s32.totalorder %s45, %s46
    %p55 = scmp.eq.s32.totalorder %s14, 0
    %p56 = por %p54, %p55
    %p57 = scmp.ne.s32.totalorder %s45, %s46
    %p58 = scmp.eq.s32.totalorder %s15, 1
    %p59 = por %p57, %p58
    %p61 = scmp.ne.s32.totalorder %s46, %s60
    %p62 = scmp.eq.s32.totalorder %s15, 0
    %p63 = por %p61, %p62
    %s65 = sadd.s32 %s64, 1
    %p68 = scmp.eq.s32.totalorder %s9, 1
    %p69 = scmp.ne.s32.totalorder %s64, %s66
    %p70 = scmp.eq.s32.totalorder %s9, 0
    %p71 = por %p69, %p70
    %p72 = scmp.ne.s32.totalorder %s64, %s66
    %p73 = scmp.eq.s32.totalorder %s14, 1
    %p74 = por %p72, %p73
    %p75 = scmp.ne.s32.totalorder %s66, %s67
    %p76 = scmp.eq.s32.totalorder %s14, 0
    %p77 = por %p75, %p76
    %p78 = scmp.ne.s32.totalorder %s66, %s67
    %p79 = scmp.eq.s32.totalorder %s15, 1
    %p80 = por %p78, %p79
    %p82 = scmp.ne.s32.totalorder %s67, %s81
    %p83 = scmp.eq.s32.totalorder %s15, 0
    %p84 = por %p82, %p83
    %s85 = ssub.s32 %s9, %s16
    %p86 = scmp.eq.s32.totalorder %s85, 0
    %s88 = sadd.s32 %s87, 1
    %s89 = scalar_select %p86, %s87, %s88
    %p92 = pneg %p86
    %p93 = scmp.eq.s32.totalorder %s9, 1
    %p94 = por %p92, %p93
    %p95 = scmp.ne.s32.totalorder %s87, %s90
    %p96 = scmp.eq.s32.totalorder %s9, 0
    %p97 = por %p95, %p96
    %p98 = scmp.ne.s32.totalorder %s87, %s90
    %p99 = scmp.eq.s32.totalorder %s14, 1
    %p100 = por %p98, %p99
    %p101 = scmp.ne.s32.totalorder %s90, %s91
    %p102 = scmp.eq.s32.totalorder %s14, 0
    %p103 = por %p101, %p102
    %p104 = scmp.ne.s32.totalorder %s90, %s91
    %p105 = scmp.eq.s32.totalorder %s15, 1
    %p106 = por %p104, %p105
    %p108 = scmp.ne.s32.totalorder %s91, %s107
    %p109 = scmp.eq.s32.totalorder %s15, 0
    %p110 = por %p108, %p109
    %p111 = scmp.le.s32.totalorder 1, %s9
    %p112 = scmp.lt.s32.totalorder %s9, 3
    %p113 = pnand %p111, %p112
    %p114 = pneg %p113
    // Predicated region
    $region9: #{_forward_impl.4} parent=5 // pred_check
      _
    $region10: #{_forward_impl.4} parent=5 // pred_check_branch
      %116 = sbr.rel (%p113) target = $region12
    $region11: #{_forward_impl.4} parent=5 // pred_region
      %s117 = ssub.s32 %s9, 1
      // Predicated region
      $region13: #{_forward_impl.4} parent=11 // pred_check
        %p118 = pneg %p56
      $region14: #{_forward_impl.4} parent=11 // pred_check_branch
        %120 = sbr.rel (%p118) target = $region16
      $region15: #{_forward_impl.4} parent=11 // pred_region
        _
      $region16: #{_forward_impl.4} parent=11 // pred_fallthru
        _
      // Predicated region
      $region17: #{_forward_impl.4} parent=11 // pred_check
        %p121 = pneg %p77
      $region18: #{_forward_impl.4} parent=11 // pred_check_branch
        %123 = sbr.rel (%p121) target = $region20
      $region19: #{_forward_impl.4} parent=11 // pred_region
        _
      $region20: #{_forward_impl.4} parent=11 // pred_fallthru
        _
    $region12: #{_forward_impl.4} parent=5 // pred_fallthru
      _
    %p124 = scmp.lt.s32.totalorder %s9, 2
    // Predicated region
    $region21: #{_forward_impl.4} parent=5 // pred_check
      %p125 = pneg %p124
    $region22: #{_forward_impl.4} parent=5 // pred_check_branch
      %127 = sbr.rel (%p125) target = $region24
    $region23: #{_forward_impl.4} parent=5 // pred_region
      // Predicated region
      $region25: #{_forward_impl.4} parent=23 // pred_check
        %p128 = pneg %p29
      $region26: #{_forward_impl.4} parent=23 // pred_check_branch
        %130 = sbr.rel (%p128) target = $region28
      $region27: #{_forward_impl.4} parent=23 // pred_region
        %s131 = smul.u32 2, %s9
        %p132 = scmp.lt.s32.totalorder %s131, 3
        %s133 = scalar_select %p132, %s131, 3
        %s134 = smul.addr %s133, 4
        %s135 = scalar_lea.vmem %s0, %s134
        %s136 = smul.u32 2, %s9
      $region28: #{_forward_impl.4} parent=23 // pred_fallthru
        _
    $region24: #{_forward_impl.4} parent=5 // pred_fallthru
      _
    %p137 = scmp.le.s32.totalorder 1, %s9
    %p138 = scmp.lt.s32.totalorder %s9, 3
    %p139 = pnand %p137, %p138
    %p140 = pneg %p139
    // Predicated region
    $region29: #{_forward_impl.4} parent=5 // pred_check
      _
    $region30: #{_forward_impl.4} parent=5 // pred_check_branch
      %142 = sbr.rel (%p139) target = $region32
    $region31: #{_forward_impl.4} parent=5 // pred_region
      %s143 = ssub.s32 %s9, 1
      %s144 = smul.u32 2, %s14
      %p145 = scmp.lt.s32.totalorder %s144, 3
      %s146 = scalar_select %p145, %s144, 3
      %s147 = smul.addr %s146, 4
      %s148 = scalar_lea.vmem %s0, %s147
      %p149 = pneg %p35
      %p150 = pneg %p32
      %p151 = pneg %p56
      %p152 = pneg %p53
      %p153 = pneg %p77
      %p154 = pneg %p74
      %p155 = pneg %p103
      %p156 = pneg %p100
      %s157 = smul.u32 2, %s14
      %p158 = scmp.lt.s32.totalorder %s157, 3
      %s159 = scalar_select %p158, %s157, 3
      %s160 = smul.addr %s159, 4
      %s161 = scalar_lea.vmem %s3, %s160
      %s162 = smul.u32 2, %s14
      %p163 = scmp.lt.s32.totalorder %s162, 3
      %s164 = scalar_select %p163, %s162, 3
      %s165 = smul.addr %s164, 4
      %s166 = scalar_lea.vmem %s0, %s165
      %s167 = smul.u32 2, %s14
      %s168 = smul.u32 2, %s14
      %p169 = scmp.lt.s32.totalorder %s168, 3
      %s170 = scalar_select %p169, %s168, 3
      %s171 = smul.addr %s170, 4
      %s172 = scalar_lea.vmem %s3, %s171
      %s173 = smul.u32 2, %s14
      %v175 = vld [vmem:[%s166] sm:$0xf]
      %v176 = vld [vmem:[%s166 + $0x4] sm:$0xf]
      %v177 = vld [vmem:[%s1] sm:$0xf]
      %v178 = vld [vmem:[%s1 + $0x4] sm:$0xf]
      %v179 = vld [vmem:[%s1 + $0x8] sm:$0xf]
      %v180 = vld [vmem:[%s1 + $0xc] sm:$0xf]
      %v181 = vld [vmem:[%s1 + $0x10] sm:$0xf]
      %v182 = vld [vmem:[%s1 + $0x14] sm:$0xf]
      %v183 = vld [vmem:[%s1 + $0x18] sm:$0xf]
      %v184 = vld [vmem:[%s1 + $0x1c] sm:$0xf]
      %v185 = vld [vmem:[%s1 + $0x20] sm:$0xf]
      %v186 = vld [vmem:[%s2] sm:$0x1]
      %v188 = vlaneseq
      %v189 = vshrl.u32 %v188, 7
      %v190 = vsub.s32 0, %v189
      %v191 = vrot.slane %v186, %v190
      %v195 = vunpack.c.l.b16 %v175
      %v196 = vunpack.c.l.b16 %v176
      %v197 = vpack.c.b16 %v196, %v195
      %v207 = vunpack.c.l.b16 %v177
      %v208 = vunpack.c.l.b16 %v178
      %v209 = vunpack.c.l.b16 %v179
      %v210 = vunpack.c.l.b16 %v180
      %v211 = vunpack.c.l.b16 %v181
      %v212 = vunpack.c.l.b16 %v182
      %v213 = vunpack.c.l.b16 %v183
      %v214 = vunpack.c.l.b16 %v184
      %v215 = vunpack.c.l.b16 %v185
      %v216 = vpack.c.b16 %v208, %v207
      %v217 = vpack.c.b16 %v210, %v209
      %v218 = vpack.c.b16 %v212, %v211
      %v219 = vpack.c.b16 %v214, %v213
      %v220 = vpack.c.b16 %v215, %v215
      %vm225 = vcmask 588800
      %v227 = vsel %vm225, %v197, 0
      %vm229 = vcmask 1043456
      %v231 = vsel %vm229, %v220, 0
      %233 = vmatprep.subr.bf16.mxu0 0
      %234 = vmatpush1.bf16.msra.mxu0 %v216
      %235 = vmatprep.subr.bf16.mxu0 0
      %236 = vmatpush1.bf16.msra.mxu0 %v217
      %237 = vmatprep.subr.bf16.mxu0 0
      %238 = vmatpush1.bf16.msra.mxu0 %v218
      %239 = vmatprep.subr.bf16.mxu0 0
      %240 = vmatpush1.bf16.msra.mxu0 %v219
      %241 = vmatprep.subr.bf16.mxu0 0
      %242 = vmatpush1.bf16.msra.mxu0 %v231
      %243 = vmatprep.subr.bf16.mxu0 0
      %244 = vmatpush1.bf16.msra.mxu0 0
      %245 = vmatprep.subr.bf16.mxu0 0
      %246 = vmatpush1.bf16.msra.mxu0 0
      %247 = vmatprep.subr.bf16.mxu0 0
      %248 = vmatpush1.bf16.msra.mxu0 0
      %249 = vmatprep.subr.bf16.mxu0 0
      %250 = vmatpush1.bf16.msra.mxu0 0
      %251 = vmatprep.subr.bf16.mxu0 0
      %252 = vmatpush1.bf16.msra.mxu0 0
      %253 = vmatprep.subr.bf16.mxu0 0
      %254 = vmatpush1.bf16.msra.mxu0 0
      %255 = vmatprep.subr.bf16.mxu0 0
      %256 = vmatpush1.bf16.msra.mxu0 0
      %257 = vmatprep.subr.bf16.mxu0 0
      %258 = vmatpush1.bf16.msra.mxu0 0
      %259 = vmatprep.subr.bf16.mxu0 0
      %260 = vmatpush1.bf16.msra.mxu0 0
      %261 = vmatprep.subr.bf16.mxu0 0
      %262 = vmatpush1.bf16.msra.mxu0 0
      %263 = vmatprep.subr.bf16.mxu0 0
      %264 = vmatpush1.bf16.msra.mxu0 0
      %265 = vmatprep.mubr.bf16.mxu0 0
      %266 = vmatmul.mubr.bf16.gmra.mrb[0].mxu0 %v227
      %v267 = vpop.f32.mrb[0].mxu0
      %v268 = vadd.f32 %v191, %v267
      %v269 = vpop.f32.mrb[0].mxu0
      %v270 = vpop.f32.mrb[0].mxu0
      %v271 = vadd.f32 %v191, %v270
      %v272 = vpop.f32.mrb[0].mxu0
      %273 = vdwg.mxu0
      %v274 = vmax.f32 %v268, 0.0
      %v275 = vmax.f32 %v271, 0.0
      %v276 = vpack.c.bf16 %v275, %v274
      %v278 = vunpack.c.l.b16 %v276
      %v279 = vunpack.c.h.b16 %v276
      %v280 = vpack.c.b16 %v278, %v278
      %v281 = vpack.c.b16 %v279, %v279
      %vm284 = vcmask 125952
      %285 = vst.msk [vmem:[%s172] sm:$0xf] %vm284, %v280
      %286 = vst.msk [vmem:[%s172 + $0x4] sm:$0xf] %vm284, %v281
      %s287 = smul.u32 2, %s14
      %p288 = scmp.lt.s32.totalorder %s287, 3
      %s289 = scalar_select %p288, %s287, 3
      %s290 = smul.addr %s289, 4
      %s291 = scalar_lea.vmem %s3, %s290
      // Predicated region
      $region33: #{_forward_impl.4} parent=31 // pred_check
        %p292 = pneg %p100
      $region34: #{_forward_impl.4} parent=31 // pred_check_branch
        %294 = sbr.rel (%p292) target = $region36
      $region35: #{_forward_impl.4} parent=31 // pred_region
        %s295 = smul.u32 2, %s14
      $region36: #{_forward_impl.4} parent=31 // pred_fallthru
        _
    $region32: #{_forward_impl.4} parent=5 // pred_fallthru
      _
    %p296 = scmp.le.s32.totalorder 2, %s9
    // Predicated region
    $region37: #{_forward_impl.4} parent=5 // pred_check
      %p297 = pneg %p296
    $region38: #{_forward_impl.4} parent=5 // pred_check_branch
      %299 = sbr.rel (%p297) target = $region40
    $region39: #{_forward_impl.4} parent=5 // pred_region
      %s300 = ssub.s32 %s9, 2
      // Predicated region
      $region41: #{_forward_impl.4} parent=39 // pred_check
        %p301 = pneg %p106
      $region42: #{_forward_impl.4} parent=39 // pred_check_branch
        %303 = sbr.rel (%p301) target = $region44
      $region43: #{_forward_impl.4} parent=39 // pred_region
        %s304 = smul.u32 2, %s15
        %p305 = scmp.lt.s32.totalorder %s304, 3
        %s306 = scalar_select %p305, %s304, 3
        %s307 = smul.addr %s306, 4
        %s308 = scalar_lea.vmem %s3, %s307
      $region44: #{_forward_impl.4} parent=39 // pred_fallthru
        _
    $region40: #{_forward_impl.4} parent=5 // pred_fallthru
      _
  $region6: #{_forward_impl.4} parent=0 // loop_footer
    %s13 = sadd.s32 1, %s9
  $region7: #{_forward_impl.4} parent=0 // loop_footer_branch
    %8 = sbr.rel target = $region3
  $region8: #{_forward_impl.4} parent=0 // loop_exit
    _

// kernel: _forward_impl.5
$region0: #{_forward_impl.5}
  #allocation0 [shape = 'u32[]', space=smem, size = 0x4, offset = 0x4, fixed_abs, tag = 'smem constant byte address 0x4 - core index']
  #allocation1 [shape = 'u32[144,128]{1,0:T(1,128)}', space=vmem, size = 0x12000, scoped, tag = 'internal scratch']
  %s0 = inlined_call_operand.vmem [shape: bf16[8,144], index: 0, kind: input, shape index: {}]
  %s1 = inlined_call_operand.vmem [shape: bf16[144,32], index: 1, kind: input, shape index: {}]
  %s2 = inlined_call_operand.vmem [shape: f32[1,32], index: 2, kind: input, shape index: {}]
  %s3 = inlined_call_operand.vmem [shape: bf16[8,32], index: 3, kind: output, shape index: {}]
  %s4 = sld [smem:[#allocation0]]
  $region22: #{_forward_impl.5} parent=0
    _
  %s6 = ssub.s32 1, %s4
  %s7 = scalar_select 0, %s6, %s4
  // Predicated region
  $region2: #{_forward_impl.5} parent=0 // pred_check
    _
  $region3: #{_forward_impl.5} parent=0 // pred_check_branch
    %9 = sbr.rel (0) target = $region5
  $region4: #{_forward_impl.5} parent=0 // pred_region
    _
  $region5: #{_forward_impl.5} parent=0 // pred_fallthru
    _
  // Predicated region
  $region6: #{_forward_impl.5} parent=0 // pred_check
    _
  $region7: #{_forward_impl.5} parent=0 // pred_check_branch
    %11 = sbr.rel (0) target = $region9
  $region8: #{_forward_impl.5} parent=0 // pred_region
    _
  $region9: #{_forward_impl.5} parent=0 // pred_fallthru
    _
  // Predicated region
  $region10: #{_forward_impl.5} parent=0 // pred_check
    _
  $region11: #{_forward_impl.5} parent=0 // pred_check_branch
    %13 = sbr.rel (0) target = $region13
  $region12: #{_forward_impl.5} parent=0 // pred_region
    _
  $region13: #{_forward_impl.5} parent=0 // pred_fallthru
    _
  %v15 = vld [vmem:[%s0] sm:$0xff]
  %v16 = vld [vmem:[%s1] sm:$0xf]
  %v17 = vld [vmem:[%s1 + $0x4] sm:$0xf]
  %v18 = vld [vmem:[%s1 + $0x8] sm:$0xf]
  %v19 = vld [vmem:[%s1 + $0xc] sm:$0xf]
  %v20 = vld [vmem:[%s1 + $0x10] sm:$0xf]
  %v21 = vld [vmem:[%s1 + $0x14] sm:$0xf]
  %v22 = vld [vmem:[%s1 + $0x18] sm:$0xf]
  %v23 = vld [vmem:[%s1 + $0x1c] sm:$0xf]
  %v24 = vld [vmem:[%s1 + $0x20] sm:$0xf]
  %v25 = vld [vmem:[%s1 + $0x24] sm:$0xf]
  %v26 = vld [vmem:[%s1 + $0x28] sm:$0xf]
  %v27 = vld [vmem:[%s1 + $0x2c] sm:$0xf]
  %v28 = vld [vmem:[%s1 + $0x30] sm:$0xf]
  %v29 = vld [vmem:[%s1 + $0x34] sm:$0xf]
  %v30 = vld [vmem:[%s1 + $0x38] sm:$0xf]
  %v31 = vld [vmem:[%s1 + $0x3c] sm:$0xf]
  %v32 = vld [vmem:[%s1 + $0x40] sm:$0xf]
  %v33 = vld [vmem:[%s1 + $0x44] sm:$0xf]
  %v34 = vld [vmem:[%s2] sm:$0x1]
  %v36 = vlaneseq
  %v37 = vshrl.u32 %v36, 7
  %v38 = vsub.s32 0, %v37
  %v39 = vrot.slane %v34, %v38
  %v42 = vunpack.c.l.b16 %v15
  %v43 = vunpack.c.h.b16 %v15
  %v44 = vpack.c.b16 %v42, %v42
  %v45 = vpack.c.b16 %v43, %v43
  %v65 = vunpack.c.l.b16 %v16
  %v66 = vunpack.c.l.b16 %v17
  %v67 = vunpack.c.l.b16 %v18
  %v68 = vunpack.c.l.b16 %v19
  %v69 = vunpack.c.l.b16 %v20
  %v70 = vunpack.c.l.b16 %v21
  %v71 = vunpack.c.l.b16 %v22
  %v72 = vunpack.c.l.b16 %v23
  %v73 = vunpack.c.l.b16 %v24
  %v74 = vunpack.c.l.b16 %v25
  %v75 = vunpack.c.l.b16 %v26
  %v76 = vunpack.c.l.b16 %v27
  %v77 = vunpack.c.l.b16 %v28
  %v78 = vunpack.c.l.b16 %v29
  %v79 = vunpack.c.l.b16 %v30
  %v80 = vunpack.c.l.b16 %v31
  %v81 = vunpack.c.l.b16 %v32
  %v82 = vunpack.c.l.b16 %v33
  %v83 = vpack.c.b16 %v66, %v65
  %v84 = vpack.c.b16 %v68, %v67
  %v85 = vpack.c.b16 %v70, %v69
  %v86 = vpack.c.b16 %v72, %v71
  %v87 = vpack.c.b16 %v74, %v73
  %v88 = vpack.c.b16 %v76, %v75
  %v89 = vpack.c.b16 %v78, %v77
  %v90 = vpack.c.b16 %v80, %v79
  %v91 = vpack.c.b16 %v82, %v81
  %vm101 = vcmask 130048
  %v103 = vsel %vm101, %v45, 0
  %105 = vmatprep.subr.bf16.mxu0 0
  %106 = vmatpush1.bf16.msra.mxu0 %v83
  %107 = vmatprep.subr.bf16.mxu0 0
  %108 = vmatpush1.bf16.msra.mxu0 %v84
  %109 = vmatprep.subr.bf16.mxu0 0
  %110 = vmatpush1.bf16.msra.mxu0 %v85
  %111 = vmatprep.subr.bf16.mxu0 0
  %112 = vmatpush1.bf16.msra.mxu0 %v86
  %113 = vmatprep.subr.bf16.mxu0 0
  %114 = vmatpush1.bf16.msra.mxu0 %v87
  %115 = vmatprep.subr.bf16.mxu0 0
  %116 = vmatpush1.bf16.msra.mxu0 %v88
  %117 = vmatprep.subr.bf16.mxu0 0
  %118 = vmatpush1.bf16.msra.mxu0 %v89
  %119 = vmatprep.subr.bf16.mxu0 0
  %120 = vmatpush1.bf16.msra.mxu0 %v90
  %121 = vmatprep.subr.bf16.mxu0 0
  %122 = vmatpush1.bf16.msra.mxu0 %v91
  %123 = vmatprep.subr.bf16.mxu0 0
  %124 = vmatpush1.bf16.msra.mxu0 0
  %125 = vmatprep.subr.bf16.mxu0 0
  %126 = vmatpush1.bf16.msra.mxu0 0
  %127 = vmatprep.subr.bf16.mxu0 0
  %128 = vmatpush1.bf16.msra.mxu0 0
  %129 = vmatprep.subr.bf16.mxu0 0
  %130 = vmatpush1.bf16.msra.mxu0 0
  %131 = vmatprep.subr.bf16.mxu0 0
  %132 = vmatpush1.bf16.msra.mxu0 0
  %133 = vmatprep.subr.bf16.mxu0 0
  %134 = vmatpush1.bf16.msra.mxu0 0
  %135 = vmatprep.subr.bf16.mxu0 0
  %136 = vmatpush1.bf16.msra.mxu0 0
  %137 = vmatprep.mubr.bf16.mxu0 %v103
  %138 = vmatmul.mubr.bf16.gmra.mrb[0].mxu0 %v44
  %v139 = vpop.f32.mrb[0].mxu0
  %v140 = vadd.f32 %v39, %v139
  %v141 = vpop.f32.mrb[0].mxu0
  %v142 = vpop.f32.mrb[0].mxu0
  %v143 = vpop.f32.mrb[0].mxu0
  %144 = vdwg.mxu0
  %v145 = vmax.f32 %v140, 0.0
  %v146 = vpack.c.bf16 %v145, %v145
  %vm147 = vcmask 257024
  %148 = vst.msk [vmem:[%s3] sm:$0xf] %vm147, %v146
  // Predicated region
  $region14: #{_forward_impl.5} parent=0 // pred_check
    _
  $region15: #{_forward_impl.5} parent=0 // pred_check_branch
    %150 = sbr.rel (0) target = $region17
  $region16: #{_forward_impl.5} parent=0 // pred_region
    _
  $region17: #{_forward_impl.5} parent=0 // pred_fallthru
    _
  // Predicated region
  $region18: #{_forward_impl.5} parent=0 // pred_check
    _
  $region19: #{_forward_impl.5} parent=0 // pred_check_branch
    %152 = sbr.rel (0) target = $region21
  $region20: #{_forward_impl.5} parent=0 // pred_region
    _
  $region21: #{_forward_impl.5} parent=0 // pred_fallthru
    _

</llo_original>
